<compile_context>
chip_gen: v7x
topology: tpu7x:2x2x1
jax: 0.10.0
libtpu: 0.0.40
codegen_flags: <defaults>
</compile_context>

<pallas_src>
import functools

import jax
import jax.numpy as jnp
from jax import lax
from jax.experimental import pallas as pl
from jax.experimental.pallas import tpu as pltpu


# ----------------------------- fused Pallas kernel -----------------------------

def hierarchy_block_kernel(img_ref, mask_ref, w1_ref, w2_ref, w3_ref, b3_ref, out_ref, *,
                           H: int, W: int, bt: int, n: int, eps: float = 1e-5):
    """One block of bt samples: conv+IN+ReLU -> conv+IN+ReLU -> conv+bias+ReLU -> cum-subtract."""
    HW = H * W
    N = bt * HW                      # fused (sample-major) lane axis
    C = img_ref.shape[0]

    masks = mask_ref[...]            # (9, N) f32, precomputed in the wrapper (hoisted)

    def conv3x3(x, w_ref):
        """x: (Cin, N); w_ref: (Cout, 9*Cin).  im2col -> ONE MXU matmul (K = 9*Cin)."""
        taps = []
        t = 0
        for dy in (-1, 0, 1):        # dy = kh - 1
            for dx in (-1, 0, 1):    # dx = kw - 1
                off = dy * W + dx
                shifted = pltpu.roll(x, shift=(-off) % N, axis=1) if off != 0 else x
                taps.append(shifted * masks[t])          # mask zeros padding + sample wraparound
                t += 1
        patches = jnp.concatenate(taps, axis=0)          # (9*Cin, N)
        return jnp.dot(w_ref[...], patches.astype(w_ref.dtype),
                       preferred_element_type=jnp.float32)  # (Cout, N) f32 accumulate

    def instance_norm(y):
        # One-pass stats (sum, sum-of-squares); per-sample = per HW lane segment.
        inv = 1.0 / HW
        segs = []
        for b in range(bt):          # bt is tiny and static -> unrolled
            seg = y[:, b * HW:(b + 1) * HW] if bt > 1 else y
            s = jnp.sum(seg, axis=1, keepdims=True)
            ss = jnp.sum(seg * seg, axis=1, keepdims=True)
            mu = s * inv
            var = ss * inv - mu * mu
            segs.append((seg - mu) * lax.rsqrt(var + eps))
        return segs[0] if bt == 1 else jnp.concatenate(segs, axis=1)

    x = img_ref[...]                                               # (C, N)
    # conv1 / conv2 biases omitted: InstanceNorm's mean subtraction cancels them exactly.
    h = jnp.maximum(instance_norm(conv3x3(x, w1_ref)), 0.0)        # (hid, N)
    h = jnp.maximum(instance_norm(conv3x3(h, w2_ref)), 0.0)        # (hid, N)
    feat = jnp.maximum(conv3x3(h, w3_ref) + b3_ref[...], 0.0)      # (n*C, N)

    # Hierarchy: S_k = img - sum_{j<=k} feat_j ; single full-width store of the concat.
    run = x
    outs = []
    for k in range(n):               # n is tiny and static -> unrolled, stays in registers
        run = run - feat[k * C:(k + 1) * C, :]
        outs.append(run)
    out_ref[...] = jnp.concatenate(outs, axis=0)                   # (Cout, N), one dense store


# ----------------------------- JAX wrapper -----------------------------

def _pick_batch_tile(B: int, HW: int, *, target_lanes: int = 2048, min_grid: int = 2) -> int:
    """Samples per grid block: fatten the lane axis but keep >=2 blocks (v7x has 2 TCs)."""
    bt = max(1, min(B, max(1, target_lanes // HW)))
    while bt > 1 and -(-B // bt) < min_grid:
        bt -= 1
    while B % bt != 0:               # require clean blocking
        bt -= 1
    return bt


def hierarchy_block_forward(img, params, *, matmul_dtype=jnp.float32):
    """HierarchyBlock.forward: NCHW image in, NCHW (B, out_channel, H, W) out."""
    B, C, H, W = img.shape
    HW = H * W
    w1, w2, w3, b3 = params["w1"], params["w2"], params["w3"], params["b3"]
    hid = w1.shape[0]
    Cout = w3.shape[0]
    assert Cout % C == 0
    n = Cout // C

    bt = _pick_batch_tile(B, HW)
    G = B // bt
    N = bt * HW

    def prep_w(w):   # OIHW (Cout, Cin, 3, 3) -> (Cout, 9*Cin), row index = (kh*3+kw)*Cin + ci
        co, ci = w.shape[0], w.shape[1]
        return jnp.transpose(w, (0, 2, 3, 1)).reshape(co, 9 * ci).astype(matmul_dtype)

    w1p, w2p, w3p = prep_w(w1), prep_w(w2), prep_w(w3)
    b3p = b3.reshape(Cout, 1).astype(jnp.float32)

    # Channels-first, lane-dense layout: (C, B*HW), sample-major lanes. Tiny XLA-side transpose.
    img_l = jnp.transpose(img.reshape(B, C, HW), (1, 0, 2)).reshape(C, B * HW).astype(jnp.float32)

    # 3x3 SAME-pad boundary masks, built once here (hoisted out of the kernel): (9, bt*HW).
    hw = jnp.arange(HW)
    h_i, w_i = hw // W, hw % W
    mrows = []
    for dy in (-1, 0, 1):
        for dx in (-1, 0, 1):
            m = jnp.ones((HW,), bool)
            if dy == -1:
                m = m & (h_i >= 1)
            elif dy == 1:
                m = m & (h_i < H - 1)
            if dx == -1:
                m = m & (w_i >= 1)
            elif dx == 1:
                m = m & (w_i < W - 1)
            mrows.append(m)
    mask = jnp.tile(jnp.stack(mrows).astype(jnp.float32), (1, bt))   # repeats per folded sample

    kern = functools.partial(hierarchy_block_kernel, H=H, W=W, bt=bt, n=n)
    out = pl.pallas_call(
        kern,
        out_shape=jax.ShapeDtypeStruct((Cout, B * HW), jnp.float32),
        grid=(G,),
        in_specs=[
            pl.BlockSpec((C, N), lambda i: (0, i)),          # image block: bt samples of lanes
            pl.BlockSpec((9, N), lambda i: (0, 0)),          # boundary masks (grid-invariant)
            pl.BlockSpec(w1p.shape, lambda i: (0, 0)),       # weights (grid-invariant)
            pl.BlockSpec(w2p.shape, lambda i: (0, 0)),
            pl.BlockSpec(w3p.shape, lambda i: (0, 0)),
            pl.BlockSpec((Cout, 1), lambda i: (0, 0)),
        ],
        out_specs=pl.BlockSpec((Cout, N), lambda i: (0, i)),
        compiler_params=pltpu.CompilerParams(dimension_semantics=("parallel",)),
    )(img_l, mask, w1p, w2p, w3p, b3p)

    return jnp.transpose(out.reshape(Cout, B, HW), (1, 0, 2)).reshape(B, Cout, H, W)


def init_params(key, inp_channel, out_channel, channel_mult=2):
    hid = inp_channel * channel_mult
    ks = jax.random.split(key, 6)

    def conv_init(kw, kb, cin, cout):
        w = jax.random.normal(kw, (cout, cin, 3, 3), jnp.float32) * 0.2
        b = jax.random.normal(kb, (cout,), jnp.float32) * 0.05
        return w, b

    w1, b1 = conv_init(ks[0], ks[1], inp_channel, hid)
    w2, b2 = conv_init(ks[2], ks[3], hid, hid)
    w3, b3 = conv_init(ks[4], ks[5], hid, out_channel)
    # TODO(synk): alpha / StyleMLP / AdaIN params are only consumed by reverse(), not forward().
    return dict(w1=w1, b1=b1, w2=w2, b2=b2, w3=w3, b3=b3)


# ----------------------------- pure-JAX reference (verification only) -----------------------------

def _reference_forward(img, params):
    def conv(x, w, b):
        y = lax.conv_general_dilated(x, w, (1, 1), "SAME",
                                     dimension_numbers=("NCHW", "OIHW", "NCHW"),
                                     precision=lax.Precision.HIGHEST)
        return y + b[None, :, None, None]

    def inorm(x, eps=1e-5):
        mu = x.mean(axis=(2, 3), keepdims=True)
        var = ((x - mu) ** 2).mean(axis=(2, 3), keepdims=True)
        return (x - mu) / jnp.sqrt(var + eps)

    relu = jax.nn.relu
    h = relu(inorm(conv(img, params["w1"], params["b1"])))      # b1/b2 kept here to verify the
    h = relu(inorm(conv(h, params["w2"], params["b2"])))        # bias-cancellation claim
    feat = relu(conv(h, params["w3"], params["b3"]))
    B, C, H, W = img.shape
    n = feat.shape[1] // C
    feats = feat.reshape(B, n, C, H, W)
    outs = img[:, None] - jnp.cumsum(feats, axis=1)
    return outs.reshape(B, n * C, H, W)


if __name__ == "__main__":
    B, C, H, W = 2, 4, 16, 16
    out_channel = 8        # multiple of inp_channel -> n = 2 cumulative stages; hid_channel = 8
    key = jax.random.PRNGKey(0)
    k_param, k_img = jax.random.split(key)
    params = init_params(k_param, inp_channel=C, out_channel=out_channel)
    img = jax.random.normal(k_img, (B, C, H, W), jnp.float32)

    out = jax.block_until_ready(hierarchy_block_forward(img, params))
    ref = jax.block_until_ready(_reference_forward(img, params))
    assert out.shape == (B, out_channel, H, W), out.shape
    # Kernel dots use default MXU precision (reference uses HIGHEST) -> modest tolerance.
    assert jnp.allclose(out, ref, atol=2e-2, rtol=2e-2), float(jnp.max(jnp.abs(out - ref)))
    print("KERNEL_OK")
</pallas_src>

<mosaic_0001>
module attributes {stable_mosaic.version = 11 : i64} {
  func.func @hierarchy_block_kernel(%arg0: i32, %arg1: memref<4x256xf32, #tpu.memory_space<vmem>>, %arg2: memref<9x256xf32, #tpu.memory_space<vmem>>, %arg3: memref<8x36xf32, #tpu.memory_space<vmem>>, %arg4: memref<8x72xf32, #tpu.memory_space<vmem>>, %arg5: memref<8x72xf32, #tpu.memory_space<vmem>>, %arg6: memref<8x1xf32, #tpu.memory_space<vmem>>, %arg7: memref<8x256xf32, #tpu.memory_space<vmem>>) attributes {dimension_semantics = [#tpu.dimension_semantics<parallel>], iteration_bounds = array<i64: 2>, scalar_prefetch = 0 : i64, scratch_operands = 0 : i64, tpu.core_type = #tpu.core_type<tc>, window_params = [{transform_indices = @transform_0, window_bounds = array<i64: 4, 256>}, {pipeline_mode = #tpu.pipeline_mode<synchronous>, transform_indices = @transform_1, window_bounds = array<i64: 9, 256>}, {pipeline_mode = #tpu.pipeline_mode<synchronous>, transform_indices = @transform_2, window_bounds = array<i64: 8, 36>}, {pipeline_mode = #tpu.pipeline_mode<synchronous>, transform_indices = @transform_3, window_bounds = array<i64: 8, 72>}, {pipeline_mode = #tpu.pipeline_mode<synchronous>, transform_indices = @transform_4, window_bounds = array<i64: 8, 72>}, {pipeline_mode = #tpu.pipeline_mode<synchronous>, transform_indices = @transform_5, window_bounds = array<i64: 8, 1>}, {transform_indices = @transform_6, window_bounds = array<i64: 8, 256>}]} {
    %c0 = arith.constant 0 : index
    %c0_0 = arith.constant 0 : index
    %0 = vector.load %arg2[%c0, %c0_0] : memref<9x256xf32, #tpu.memory_space<vmem>>, vector<9x256xf32>
    %c0_1 = arith.constant 0 : index
    %c0_2 = arith.constant 0 : index
    %1 = vector.load %arg1[%c0_1, %c0_2] : memref<4x256xf32, #tpu.memory_space<vmem>>, vector<4x256xf32>
    %c17_i32 = arith.constant 17 : i32
    %2 = tpu.dynamic_rotate %1 by %c17_i32 dim 1 : vector<4x256xf32>, i32 -> vector<4x256xf32>
    %3 = vector.extract_strided_slice %0 {offsets = [0, 0], sizes = [1, 256], strides = [1, 1]} : vector<9x256xf32> to vector<1x256xf32>
    %4 = vector.shape_cast %3 : vector<1x256xf32> to vector<256xf32>
    %5 = vector.shape_cast %4 : vector<256xf32> to vector<1x256xf32>
    %6 = vector.broadcast %5 : vector<1x256xf32> to vector<4x256xf32>
    %7 = arith.mulf %2, %6 : vector<4x256xf32>
    %c16_i32 = arith.constant 16 : i32
    %8 = tpu.dynamic_rotate %1 by %c16_i32 dim 1 : vector<4x256xf32>, i32 -> vector<4x256xf32>
    %9 = vector.extract_strided_slice %0 {offsets = [1, 0], sizes = [1, 256], strides = [1, 1]} : vector<9x256xf32> to vector<1x256xf32>
    %10 = vector.shape_cast %9 : vector<1x256xf32> to vector<256xf32>
    %11 = vector.shape_cast %10 : vector<256xf32> to vector<1x256xf32>
    %12 = vector.broadcast %11 : vector<1x256xf32> to vector<4x256xf32>
    %13 = arith.mulf %8, %12 : vector<4x256xf32>
    %c15_i32 = arith.constant 15 : i32
    %14 = tpu.dynamic_rotate %1 by %c15_i32 dim 1 : vector<4x256xf32>, i32 -> vector<4x256xf32>
    %15 = vector.extract_strided_slice %0 {offsets = [2, 0], sizes = [1, 256], strides = [1, 1]} : vector<9x256xf32> to vector<1x256xf32>
    %16 = vector.shape_cast %15 : vector<1x256xf32> to vector<256xf32>
    %17 = vector.shape_cast %16 : vector<256xf32> to vector<1x256xf32>
    %18 = vector.broadcast %17 : vector<1x256xf32> to vector<4x256xf32>
    %19 = arith.mulf %14, %18 : vector<4x256xf32>
    %c1_i32 = arith.constant 1 : i32
    %20 = tpu.dynamic_rotate %1 by %c1_i32 dim 1 : vector<4x256xf32>, i32 -> vector<4x256xf32>
    %21 = vector.extract_strided_slice %0 {offsets = [3, 0], sizes = [1, 256], strides = [1, 1]} : vector<9x256xf32> to vector<1x256xf32>
    %22 = vector.shape_cast %21 : vector<1x256xf32> to vector<256xf32>
    %23 = vector.shape_cast %22 : vector<256xf32> to vector<1x256xf32>
    %24 = vector.broadcast %23 : vector<1x256xf32> to vector<4x256xf32>
    %25 = arith.mulf %20, %24 : vector<4x256xf32>
    %26 = vector.extract_strided_slice %0 {offsets = [4, 0], sizes = [1, 256], strides = [1, 1]} : vector<9x256xf32> to vector<1x256xf32>
    %27 = vector.shape_cast %26 : vector<1x256xf32> to vector<256xf32>
    %28 = vector.shape_cast %27 : vector<256xf32> to vector<1x256xf32>
    %29 = vector.broadcast %28 : vector<1x256xf32> to vector<4x256xf32>
    %30 = arith.mulf %1, %29 : vector<4x256xf32>
    %c255_i32 = arith.constant 255 : i32
    %31 = tpu.dynamic_rotate %1 by %c255_i32 dim 1 : vector<4x256xf32>, i32 -> vector<4x256xf32>
    %32 = vector.extract_strided_slice %0 {offsets = [5, 0], sizes = [1, 256], strides = [1, 1]} : vector<9x256xf32> to vector<1x256xf32>
    %33 = vector.shape_cast %32 : vector<1x256xf32> to vector<256xf32>
    %34 = vector.shape_cast %33 : vector<256xf32> to vector<1x256xf32>
    %35 = vector.broadcast %34 : vector<1x256xf32> to vector<4x256xf32>
    %36 = arith.mulf %31, %35 : vector<4x256xf32>
    %c241_i32 = arith.constant 241 : i32
    %37 = tpu.dynamic_rotate %1 by %c241_i32 dim 1 : vector<4x256xf32>, i32 -> vector<4x256xf32>
    %38 = vector.extract_strided_slice %0 {offsets = [6, 0], sizes = [1, 256], strides = [1, 1]} : vector<9x256xf32> to vector<1x256xf32>
    %39 = vector.shape_cast %38 : vector<1x256xf32> to vector<256xf32>
    %40 = vector.shape_cast %39 : vector<256xf32> to vector<1x256xf32>
    %41 = vector.broadcast %40 : vector<1x256xf32> to vector<4x256xf32>
    %42 = arith.mulf %37, %41 : vector<4x256xf32>
    %c240_i32 = arith.constant 240 : i32
    %43 = tpu.dynamic_rotate %1 by %c240_i32 dim 1 : vector<4x256xf32>, i32 -> vector<4x256xf32>
    %44 = vector.extract_strided_slice %0 {offsets = [7, 0], sizes = [1, 256], strides = [1, 1]} : vector<9x256xf32> to vector<1x256xf32>
    %45 = vector.shape_cast %44 : vector<1x256xf32> to vector<256xf32>
    %46 = vector.shape_cast %45 : vector<256xf32> to vector<1x256xf32>
    %47 = vector.broadcast %46 : vector<1x256xf32> to vector<4x256xf32>
    %48 = arith.mulf %43, %47 : vector<4x256xf32>
    %c239_i32 = arith.constant 239 : i32
    %49 = tpu.dynamic_rotate %1 by %c239_i32 dim 1 : vector<4x256xf32>, i32 -> vector<4x256xf32>
    %50 = vector.extract_strided_slice %0 {offsets = [8, 0], sizes = [1, 256], strides = [1, 1]} : vector<9x256xf32> to vector<1x256xf32>
    %51 = vector.shape_cast %50 : vector<1x256xf32> to vector<256xf32>
    %52 = vector.shape_cast %51 : vector<256xf32> to vector<1x256xf32>
    %53 = vector.broadcast %52 : vector<1x256xf32> to vector<4x256xf32>
    %54 = arith.mulf %49, %53 : vector<4x256xf32>
    %55 = tpu.concatenate %7, %13, %19, %25, %30, %36, %42, %48, %54 in 0 : vector<4x256xf32>, vector<4x256xf32>, vector<4x256xf32>, vector<4x256xf32>, vector<4x256xf32>, vector<4x256xf32>, vector<4x256xf32>, vector<4x256xf32>, vector<4x256xf32> -> vector<36x256xf32>
    %c0_3 = arith.constant 0 : index
    %c0_4 = arith.constant 0 : index
    %56 = vector.load %arg3[%c0_3, %c0_4] : memref<8x36xf32, #tpu.memory_space<vmem>>, vector<8x36xf32>
    %cst = arith.constant dense<0.000000e+00> : vector<8x256xf32>
    %57 = tpu.matmul %56, %55, %cst {dimension_numbers = #tpu.dot_dimension_numbers<[1], [0], [0], [1], [0, 0, 1, 1], [], []>} : vector<8x36xf32>, vector<36x256xf32>, vector<8x256xf32> -> vector<8x256xf32>
    %cst_5 = arith.constant dense<0.000000e+00> : vector<8xf32>
    %58 = vector.multi_reduction <add>, %57, %cst_5 [1] : vector<8x256xf32> to vector<8xf32>
    %59 = vector.shape_cast %58 : vector<8xf32> to vector<8x1xf32>
    %60 = arith.mulf %57, %57 : vector<8x256xf32>
    %cst_6 = arith.constant dense<0.000000e+00> : vector<8xf32>
    %61 = vector.multi_reduction <add>, %60, %cst_6 [1] : vector<8x256xf32> to vector<8xf32>
    %62 = vector.shape_cast %61 : vector<8xf32> to vector<8x1xf32>
    %cst_7 = arith.constant 3.906250e-03 : f32
    %63 = vector.broadcast %cst_7 : f32 to vector<8x1xf32>
    %64 = arith.mulf %59, %63 : vector<8x1xf32>
    %cst_8 = arith.constant 3.906250e-03 : f32
    %65 = vector.broadcast %cst_8 : f32 to vector<8x1xf32>
    %66 = arith.mulf %62, %65 : vector<8x1xf32>
    %67 = arith.mulf %64, %64 : vector<8x1xf32>
    %68 = arith.subf %66, %67 : vector<8x1xf32>
    %69 = vector.broadcast %64 : vector<8x1xf32> to vector<8x256xf32>
    %70 = arith.subf %57, %69 : vector<8x256xf32>
    %cst_9 = arith.constant 9.99999974E-6 : f32
    %71 = vector.broadcast %cst_9 : f32 to vector<8x1xf32>
    %72 = arith.addf %68, %71 : vector<8x1xf32>
    %73 = math.rsqrt %72 : vector<8x1xf32>
    %74 = vector.broadcast %73 : vector<8x1xf32> to vector<8x256xf32>
    %75 = arith.mulf %70, %74 : vector<8x256xf32>
    %cst_10 = arith.constant 0.000000e+00 : f32
    %76 = vector.broadcast %cst_10 : f32 to vector<8x256xf32>
    %77 = arith.maximumf %75, %76 : vector<8x256xf32>
    %c17_i32_11 = arith.constant 17 : i32
    %78 = tpu.dynamic_rotate %77 by %c17_i32_11 dim 1 : vector<8x256xf32>, i32 -> vector<8x256xf32>
    %79 = vector.extract_strided_slice %0 {offsets = [0, 0], sizes = [1, 256], strides = [1, 1]} : vector<9x256xf32> to vector<1x256xf32>
    %80 = vector.shape_cast %79 : vector<1x256xf32> to vector<256xf32>
    %81 = vector.shape_cast %80 : vector<256xf32> to vector<1x256xf32>
    %82 = vector.broadcast %81 : vector<1x256xf32> to vector<8x256xf32>
    %83 = arith.mulf %78, %82 : vector<8x256xf32>
    %c16_i32_12 = arith.constant 16 : i32
    %84 = tpu.dynamic_rotate %77 by %c16_i32_12 dim 1 : vector<8x256xf32>, i32 -> vector<8x256xf32>
    %85 = vector.extract_strided_slice %0 {offsets = [1, 0], sizes = [1, 256], strides = [1, 1]} : vector<9x256xf32> to vector<1x256xf32>
    %86 = vector.shape_cast %85 : vector<1x256xf32> to vector<256xf32>
    %87 = vector.shape_cast %86 : vector<256xf32> to vector<1x256xf32>
    %88 = vector.broadcast %87 : vector<1x256xf32> to vector<8x256xf32>
    %89 = arith.mulf %84, %88 : vector<8x256xf32>
    %c15_i32_13 = arith.constant 15 : i32
    %90 = tpu.dynamic_rotate %77 by %c15_i32_13 dim 1 : vector<8x256xf32>, i32 -> vector<8x256xf32>
    %91 = vector.extract_strided_slice %0 {offsets = [2, 0], sizes = [1, 256], strides = [1, 1]} : vector<9x256xf32> to vector<1x256xf32>
    %92 = vector.shape_cast %91 : vector<1x256xf32> to vector<256xf32>
    %93 = vector.shape_cast %92 : vector<256xf32> to vector<1x256xf32>
    %94 = vector.broadcast %93 : vector<1x256xf32> to vector<8x256xf32>
    %95 = arith.mulf %90, %94 : vector<8x256xf32>
    %c1_i32_14 = arith.constant 1 : i32
    %96 = tpu.dynamic_rotate %77 by %c1_i32_14 dim 1 : vector<8x256xf32>, i32 -> vector<8x256xf32>
    %97 = vector.extract_strided_slice %0 {offsets = [3, 0], sizes = [1, 256], strides = [1, 1]} : vector<9x256xf32> to vector<1x256xf32>
    %98 = vector.shape_cast %97 : vector<1x256xf32> to vector<256xf32>
    %99 = vector.shape_cast %98 : vector<256xf32> to vector<1x256xf32>
    %100 = vector.broadcast %99 : vector<1x256xf32> to vector<8x256xf32>
    %101 = arith.mulf %96, %100 : vector<8x256xf32>
    %102 = vector.extract_strided_slice %0 {offsets = [4, 0], sizes = [1, 256], strides = [1, 1]} : vector<9x256xf32> to vector<1x256xf32>
    %103 = vector.shape_cast %102 : vector<1x256xf32> to vector<256xf32>
    %104 = vector.shape_cast %103 : vector<256xf32> to vector<1x256xf32>
    %105 = vector.broadcast %104 : vector<1x256xf32> to vector<8x256xf32>
    %106 = arith.mulf %77, %105 : vector<8x256xf32>
    %c255_i32_15 = arith.constant 255 : i32
    %107 = tpu.dynamic_rotate %77 by %c255_i32_15 dim 1 : vector<8x256xf32>, i32 -> vector<8x256xf32>
    %108 = vector.extract_strided_slice %0 {offsets = [5, 0], sizes = [1, 256], strides = [1, 1]} : vector<9x256xf32> to vector<1x256xf32>
    %109 = vector.shape_cast %108 : vector<1x256xf32> to vector<256xf32>
    %110 = vector.shape_cast %109 : vector<256xf32> to vector<1x256xf32>
    %111 = vector.broadcast %110 : vector<1x256xf32> to vector<8x256xf32>
    %112 = arith.mulf %107, %111 : vector<8x256xf32>
    %c241_i32_16 = arith.constant 241 : i32
    %113 = tpu.dynamic_rotate %77 by %c241_i32_16 dim 1 : vector<8x256xf32>, i32 -> vector<8x256xf32>
    %114 = vector.extract_strided_slice %0 {offsets = [6, 0], sizes = [1, 256], strides = [1, 1]} : vector<9x256xf32> to vector<1x256xf32>
    %115 = vector.shape_cast %114 : vector<1x256xf32> to vector<256xf32>
    %116 = vector.shape_cast %115 : vector<256xf32> to vector<1x256xf32>
    %117 = vector.broadcast %116 : vector<1x256xf32> to vector<8x256xf32>
    %118 = arith.mulf %113, %117 : vector<8x256xf32>
    %c240_i32_17 = arith.constant 240 : i32
    %119 = tpu.dynamic_rotate %77 by %c240_i32_17 dim 1 : vector<8x256xf32>, i32 -> vector<8x256xf32>
    %120 = vector.extract_strided_slice %0 {offsets = [7, 0], sizes = [1, 256], strides = [1, 1]} : vector<9x256xf32> to vector<1x256xf32>
    %121 = vector.shape_cast %120 : vector<1x256xf32> to vector<256xf32>
    %122 = vector.shape_cast %121 : vector<256xf32> to vector<1x256xf32>
    %123 = vector.broadcast %122 : vector<1x256xf32> to vector<8x256xf32>
    %124 = arith.mulf %119, %123 : vector<8x256xf32>
    %c239_i32_18 = arith.constant 239 : i32
    %125 = tpu.dynamic_rotate %77 by %c239_i32_18 dim 1 : vector<8x256xf32>, i32 -> vector<8x256xf32>
    %126 = vector.extract_strided_slice %0 {offsets = [8, 0], sizes = [1, 256], strides = [1, 1]} : vector<9x256xf32> to vector<1x256xf32>
    %127 = vector.shape_cast %126 : vector<1x256xf32> to vector<256xf32>
    %128 = vector.shape_cast %127 : vector<256xf32> to vector<1x256xf32>
    %129 = vector.broadcast %128 : vector<1x256xf32> to vector<8x256xf32>
    %130 = arith.mulf %125, %129 : vector<8x256xf32>
    %131 = tpu.concatenate %83, %89, %95, %101, %106, %112, %118, %124, %130 in 0 : vector<8x256xf32>, vector<8x256xf32>, vector<8x256xf32>, vector<8x256xf32>, vector<8x256xf32>, vector<8x256xf32>, vector<8x256xf32>, vector<8x256xf32>, vector<8x256xf32> -> vector<72x256xf32>
    %c0_19 = arith.constant 0 : index
    %c0_20 = arith.constant 0 : index
    %132 = vector.load %arg4[%c0_19, %c0_20] : memref<8x72xf32, #tpu.memory_space<vmem>>, vector<8x72xf32>
    %cst_21 = arith.constant dense<0.000000e+00> : vector<8x256xf32>
    %133 = tpu.matmul %132, %131, %cst_21 {dimension_numbers = #tpu.dot_dimension_numbers<[1], [0], [0], [1], [0, 0, 1, 1], [], []>} : vector<8x72xf32>, vector<72x256xf32>, vector<8x256xf32> -> vector<8x256xf32>
    %cst_22 = arith.constant dense<0.000000e+00> : vector<8xf32>
    %134 = vector.multi_reduction <add>, %133, %cst_22 [1] : vector<8x256xf32> to vector<8xf32>
    %135 = vector.shape_cast %134 : vector<8xf32> to vector<8x1xf32>
    %136 = arith.mulf %133, %133 : vector<8x256xf32>
    %cst_23 = arith.constant dense<0.000000e+00> : vector<8xf32>
    %137 = vector.multi_reduction <add>, %136, %cst_23 [1] : vector<8x256xf32> to vector<8xf32>
    %138 = vector.shape_cast %137 : vector<8xf32> to vector<8x1xf32>
    %cst_24 = arith.constant 3.906250e-03 : f32
    %139 = vector.broadcast %cst_24 : f32 to vector<8x1xf32>
    %140 = arith.mulf %135, %139 : vector<8x1xf32>
    %cst_25 = arith.constant 3.906250e-03 : f32
    %141 = vector.broadcast %cst_25 : f32 to vector<8x1xf32>
    %142 = arith.mulf %138, %141 : vector<8x1xf32>
    %143 = arith.mulf %140, %140 : vector<8x1xf32>
    %144 = arith.subf %142, %143 : vector<8x1xf32>
    %145 = vector.broadcast %140 : vector<8x1xf32> to vector<8x256xf32>
    %146 = arith.subf %133, %145 : vector<8x256xf32>
    %cst_26 = arith.constant 9.99999974E-6 : f32
    %147 = vector.broadcast %cst_26 : f32 to vector<8x1xf32>
    %148 = arith.addf %144, %147 : vector<8x1xf32>
    %149 = math.rsqrt %148 : vector<8x1xf32>
    %150 = vector.broadcast %149 : vector<8x1xf32> to vector<8x256xf32>
    %151 = arith.mulf %146, %150 : vector<8x256xf32>
    %cst_27 = arith.constant 0.000000e+00 : f32
    %152 = vector.broadcast %cst_27 : f32 to vector<8x256xf32>
    %153 = arith.maximumf %151, %152 : vector<8x256xf32>
    %c17_i32_28 = arith.constant 17 : i32
    %154 = tpu.dynamic_rotate %153 by %c17_i32_28 dim 1 : vector<8x256xf32>, i32 -> vector<8x256xf32>
    %155 = vector.extract_strided_slice %0 {offsets = [0, 0], sizes = [1, 256], strides = [1, 1]} : vector<9x256xf32> to vector<1x256xf32>
    %156 = vector.shape_cast %155 : vector<1x256xf32> to vector<256xf32>
    %157 = vector.shape_cast %156 : vector<256xf32> to vector<1x256xf32>
    %158 = vector.broadcast %157 : vector<1x256xf32> to vector<8x256xf32>
    %159 = arith.mulf %154, %158 : vector<8x256xf32>
    %c16_i32_29 = arith.constant 16 : i32
    %160 = tpu.dynamic_rotate %153 by %c16_i32_29 dim 1 : vector<8x256xf32>, i32 -> vector<8x256xf32>
    %161 = vector.extract_strided_slice %0 {offsets = [1, 0], sizes = [1, 256], strides = [1, 1]} : vector<9x256xf32> to vector<1x256xf32>
    %162 = vector.shape_cast %161 : vector<1x256xf32> to vector<256xf32>
    %163 = vector.shape_cast %162 : vector<256xf32> to vector<1x256xf32>
    %164 = vector.broadcast %163 : vector<1x256xf32> to vector<8x256xf32>
    %165 = arith.mulf %160, %164 : vector<8x256xf32>
    %c15_i32_30 = arith.constant 15 : i32
    %166 = tpu.dynamic_rotate %153 by %c15_i32_30 dim 1 : vector<8x256xf32>, i32 -> vector<8x256xf32>
    %167 = vector.extract_strided_slice %0 {offsets = [2, 0], sizes = [1, 256], strides = [1, 1]} : vector<9x256xf32> to vector<1x256xf32>
    %168 = vector.shape_cast %167 : vector<1x256xf32> to vector<256xf32>
    %169 = vector.shape_cast %168 : vector<256xf32> to vector<1x256xf32>
    %170 = vector.broadcast %169 : vector<1x256xf32> to vector<8x256xf32>
    %171 = arith.mulf %166, %170 : vector<8x256xf32>
    %c1_i32_31 = arith.constant 1 : i32
    %172 = tpu.dynamic_rotate %153 by %c1_i32_31 dim 1 : vector<8x256xf32>, i32 -> vector<8x256xf32>
    %173 = vector.extract_strided_slice %0 {offsets = [3, 0], sizes = [1, 256], strides = [1, 1]} : vector<9x256xf32> to vector<1x256xf32>
    %174 = vector.shape_cast %173 : vector<1x256xf32> to vector<256xf32>
    %175 = vector.shape_cast %174 : vector<256xf32> to vector<1x256xf32>
    %176 = vector.broadcast %175 : vector<1x256xf32> to vector<8x256xf32>
    %177 = arith.mulf %172, %176 : vector<8x256xf32>
    %178 = vector.extract_strided_slice %0 {offsets = [4, 0], sizes = [1, 256], strides = [1, 1]} : vector<9x256xf32> to vector<1x256xf32>
    %179 = vector.shape_cast %178 : vector<1x256xf32> to vector<256xf32>
    %180 = vector.shape_cast %179 : vector<256xf32> to vector<1x256xf32>
    %181 = vector.broadcast %180 : vector<1x256xf32> to vector<8x256xf32>
    %182 = arith.mulf %153, %181 : vector<8x256xf32>
    %c255_i32_32 = arith.constant 255 : i32
    %183 = tpu.dynamic_rotate %153 by %c255_i32_32 dim 1 : vector<8x256xf32>, i32 -> vector<8x256xf32>
    %184 = vector.extract_strided_slice %0 {offsets = [5, 0], sizes = [1, 256], strides = [1, 1]} : vector<9x256xf32> to vector<1x256xf32>
    %185 = vector.shape_cast %184 : vector<1x256xf32> to vector<256xf32>
    %186 = vector.shape_cast %185 : vector<256xf32> to vector<1x256xf32>
    %187 = vector.broadcast %186 : vector<1x256xf32> to vector<8x256xf32>
    %188 = arith.mulf %183, %187 : vector<8x256xf32>
    %c241_i32_33 = arith.constant 241 : i32
    %189 = tpu.dynamic_rotate %153 by %c241_i32_33 dim 1 : vector<8x256xf32>, i32 -> vector<8x256xf32>
    %190 = vector.extract_strided_slice %0 {offsets = [6, 0], sizes = [1, 256], strides = [1, 1]} : vector<9x256xf32> to vector<1x256xf32>
    %191 = vector.shape_cast %190 : vector<1x256xf32> to vector<256xf32>
    %192 = vector.shape_cast %191 : vector<256xf32> to vector<1x256xf32>
    %193 = vector.broadcast %192 : vector<1x256xf32> to vector<8x256xf32>
    %194 = arith.mulf %189, %193 : vector<8x256xf32>
    %c240_i32_34 = arith.constant 240 : i32
    %195 = tpu.dynamic_rotate %153 by %c240_i32_34 dim 1 : vector<8x256xf32>, i32 -> vector<8x256xf32>
    %196 = vector.extract_strided_slice %0 {offsets = [7, 0], sizes = [1, 256], strides = [1, 1]} : vector<9x256xf32> to vector<1x256xf32>
    %197 = vector.shape_cast %196 : vector<1x256xf32> to vector<256xf32>
    %198 = vector.shape_cast %197 : vector<256xf32> to vector<1x256xf32>
    %199 = vector.broadcast %198 : vector<1x256xf32> to vector<8x256xf32>
    %200 = arith.mulf %195, %199 : vector<8x256xf32>
    %c239_i32_35 = arith.constant 239 : i32
    %201 = tpu.dynamic_rotate %153 by %c239_i32_35 dim 1 : vector<8x256xf32>, i32 -> vector<8x256xf32>
    %202 = vector.extract_strided_slice %0 {offsets = [8, 0], sizes = [1, 256], strides = [1, 1]} : vector<9x256xf32> to vector<1x256xf32>
    %203 = vector.shape_cast %202 : vector<1x256xf32> to vector<256xf32>
    %204 = vector.shape_cast %203 : vector<256xf32> to vector<1x256xf32>
    %205 = vector.broadcast %204 : vector<1x256xf32> to vector<8x256xf32>
    %206 = arith.mulf %201, %205 : vector<8x256xf32>
    %207 = tpu.concatenate %159, %165, %171, %177, %182, %188, %194, %200, %206 in 0 : vector<8x256xf32>, vector<8x256xf32>, vector<8x256xf32>, vector<8x256xf32>, vector<8x256xf32>, vector<8x256xf32>, vector<8x256xf32>, vector<8x256xf32>, vector<8x256xf32> -> vector<72x256xf32>
    %c0_36 = arith.constant 0 : index
    %c0_37 = arith.constant 0 : index
    %208 = vector.load %arg5[%c0_36, %c0_37] : memref<8x72xf32, #tpu.memory_space<vmem>>, vector<8x72xf32>
    %cst_38 = arith.constant dense<0.000000e+00> : vector<8x256xf32>
    %209 = tpu.matmul %208, %207, %cst_38 {dimension_numbers = #tpu.dot_dimension_numbers<[1], [0], [0], [1], [0, 0, 1, 1], [], []>} : vector<8x72xf32>, vector<72x256xf32>, vector<8x256xf32> -> vector<8x256xf32>
    %c0_39 = arith.constant 0 : index
    %c0_40 = arith.constant 0 : index
    %210 = vector.load %arg6[%c0_39, %c0_40] : memref<8x1xf32, #tpu.memory_space<vmem>>, vector<8x1xf32>
    %211 = vector.broadcast %210 : vector<8x1xf32> to vector<8x256xf32>
    %212 = arith.addf %209, %211 : vector<8x256xf32>
    %cst_41 = arith.constant 0.000000e+00 : f32
    %213 = vector.broadcast %cst_41 : f32 to vector<8x256xf32>
    %214 = arith.maximumf %212, %213 : vector<8x256xf32>
    %215 = vector.extract_strided_slice %214 {offsets = [0, 0], sizes = [4, 256], strides = [1, 1]} : vector<8x256xf32> to vector<4x256xf32>
    %216 = arith.subf %1, %215 : vector<4x256xf32>
    %217 = vector.extract_strided_slice %214 {offsets = [4, 0], sizes = [4, 256], strides = [1, 1]} : vector<8x256xf32> to vector<4x256xf32>
    %218 = arith.subf %216, %217 : vector<4x256xf32>
    %219 = tpu.concatenate %216, %218 in 0 : vector<4x256xf32>, vector<4x256xf32> -> vector<8x256xf32>
    %c0_42 = arith.constant 0 : index
    %c0_43 = arith.constant 0 : index
    %220 = vector.load %arg7[%c0_42, %c0_43] : memref<8x256xf32, #tpu.memory_space<vmem>>, vector<8x256xf32>
    tpu.vector_store %arg7[%c0_42, %c0_43], %219 {strides = array<i32>} : memref<8x256xf32, #tpu.memory_space<vmem>>, vector<8x256xf32>,
    return
  }
  func.func @transform_0(%arg0: i32) -> (i32, i32) {
    %c0_i32 = arith.constant 0 : i32
    %c0_i32_0 = arith.constant 0 : i32
    return %c0_i32, %arg0 : i32, i32
  }
  func.func @transform_1(%arg0: i32) -> (i32, i32) {
    %c0_i32 = arith.constant 0 : i32
    %c0_i32_0 = arith.constant 0 : i32
    %c0_i32_1 = arith.constant 0 : i32
    return %c0_i32, %c0_i32_0 : i32, i32
  }
  func.func @transform_2(%arg0: i32) -> (i32, i32) {
    %c0_i32 = arith.constant 0 : i32
    %c0_i32_0 = arith.constant 0 : i32
    %c0_i32_1 = arith.constant 0 : i32
    return %c0_i32, %c0_i32_0 : i32, i32
  }
  func.func @transform_3(%arg0: i32) -> (i32, i32) {
    %c0_i32 = arith.constant 0 : i32
    %c0_i32_0 = arith.constant 0 : i32
    %c0_i32_1 = arith.constant 0 : i32
    return %c0_i32, %c0_i32_0 : i32, i32
  }
  func.func @transform_4(%arg0: i32) -> (i32, i32) {
    %c0_i32 = arith.constant 0 : i32
    %c0_i32_0 = arith.constant 0 : i32
    %c0_i32_1 = arith.constant 0 : i32
    return %c0_i32, %c0_i32_0 : i32, i32
  }
  func.func @transform_5(%arg0: i32) -> (i32, i32) {
    %c0_i32 = arith.constant 0 : i32
    %c0_i32_0 = arith.constant 0 : i32
    %c0_i32_1 = arith.constant 0 : i32
    return %c0_i32, %c0_i32_0 : i32, i32
  }
  func.func @transform_6(%arg0: i32) -> (i32, i32) {
    %c0_i32 = arith.constant 0 : i32
    %c0_i32_0 = arith.constant 0 : i32
    return %c0_i32, %arg0 : i32, i32
  }
}

</mosaic_0001>

<llo_original>
// kernel: tpu_custom_call.1
$region0: #{tpu_custom_call.1}
  #allocation0 [shape = 'u32[]', space=smem, size = 0x4, offset = 0x4, fixed_abs, tag = 'smem constant byte address 0x4 - core index']
  #allocation1 [shape = 'u32[144,128]{1,0:T(1,128)}', space=vmem, size = 0x12000, scoped, tag = 'internal scratch']
  %s0 = inlined_call_operand.hbm [shape: f32[4,512], index: 0, kind: input, shape index: {}]
  %s1 = inlined_call_operand.hbm [shape: f32[9,256], index: 1, kind: input, shape index: {}]
  %s2 = inlined_call_operand.vmem [shape: f32[8,36], index: 2, kind: input, shape index: {}]
  %s3 = inlined_call_operand.vmem [shape: f32[8,72], index: 3, kind: input, shape index: {}]
  %s4 = inlined_call_operand.vmem [shape: f32[8,72], index: 4, kind: input, shape index: {}]
  %s5 = inlined_call_operand.vmem [shape: f32[8,1], index: 5, kind: input, shape index: {}]
  %s6 = inlined_call_operand.hbm [shape: f32[8,512], index: 6, kind: output, shape index: {}]
  %s7 = sld [smem:[#allocation0]]
  $region65: #{tpu_custom_call.1} parent=0
    _
  %s9 = ssub.s32 1, %s7
  %s10 = scalar_select 0, %s9, %s7
  $region1: #{tpu_custom_call.1} parent=0
    #allocation2 [shape = 'u8[8192]{0}', space=vmem, size = 0x2000, scoped, tag = 'input window, operand 0']
    #allocation3 [shape = 's32[2]{0}', space=sflag, size = 0x8, scoped, tag = 'scoped memory for tpu_custom_call.1']
    #allocation4 [shape = 's32[2]{0}', space=sflag, size = 0x8, scoped, tag = 'scoped memory for tpu_custom_call.1']
    #allocation5 [shape = 'u8[16384]{0}', space=vmem, size = 0x4000, scoped, tag = 'input window, operand 1, single buffered']
    #allocation6 [shape = 's32[1]{0}', space=sflag, size = 0x4, scoped, tag = 'scoped memory for tpu_custom_call.1']
    #allocation7 [shape = 'u8[16384]{0}', space=vmem, size = 0x4000, scoped, tag = 'output window, operand 0']
    %11 = vsyncpa [#allocation3], 0
    %s12 = scalar_lea.sflag [#allocation3], 1
    %13 = vsyncpa %s12, 0
    %14 = vsyncpa [#allocation6], 0
    %15 = vsyncpa [#allocation4], 0
    %s16 = scalar_lea.sflag [#allocation4], 1
    %17 = vsyncpa %s16, 0
    loop: start=0, step=1, limit=4
    $region2: #{tpu_custom_call.1} parent=1 // loop_pre_header
      _
    $region3: #{tpu_custom_call.1} parent=1 // loop_header
      %s19 = sphi 0, %s23
      %p20 = scmp.ge.s32.totalorder %s19, 4
      %s29 = sphi 0, %s31
      %s32 = sphi 0, %s29
      %s33 = sphi 0, %s32
      %s49 = sphi 0, %s33
      %s53 = sphi 0, %s53
      %s55 = sphi 0, %s53
      %s56 = sphi 0, %s55
      %s70 = sphi 0, %s56
      %s74 = sphi 0, %s74
      %s76 = sphi 0, %s74
      %s77 = sphi 0, %s76
      %s91 = sphi 0, %s77
      %s95 = sphi 0, %s95
      %s97 = sphi 0, %s95
      %s98 = sphi 0, %s97
      %s112 = sphi 0, %s98
      %s116 = sphi 0, %s116
      %s118 = sphi 0, %s116
      %s119 = sphi 0, %s118
      %s133 = sphi 0, %s119
      %s137 = sphi 0, %s137
      %s139 = sphi 0, %s137
      %s140 = sphi 0, %s139
      %s154 = sphi 0, %s140
      %s160 = sphi 0, %s162
      %s163 = sphi 0, %s160
      %s164 = sphi 0, %s163
      %s180 = sphi 0, %s164
    $region4: #{tpu_custom_call.1} parent=1 // loop_header_branch
      %22 = sbr.rel (%p20) target = $region8
    $region5: #{tpu_custom_call.1} parent=1 // loop_body
      %s24 = ssub.s32 %s19, 1
      %s25 = ssub.s32 %s19, 2
      %s26 = sadd.s32 %s19, 1
      %s27 = ssub.s32 %s19, %s26
      %p28 = scmp.eq.s32.totalorder %s27, 0
      %s30 = sadd.s32 %s29, 1
      %s31 = scalar_select %p28, %s29, %s30
      %p34 = pneg %p28
      %p35 = scmp.eq.s32.totalorder %s19, 1
      %p36 = por %p34, %p35
      %p37 = scmp.ne.s32.totalorder %s29, %s32
      %p38 = scmp.eq.s32.totalorder %s19, 0
      %p39 = por %p37, %p38
      %p40 = scmp.ne.s32.totalorder %s29, %s32
      %p41 = scmp.eq.s32.totalorder %s24, 1
      %p42 = por %p40, %p41
      %p43 = scmp.ne.s32.totalorder %s32, %s33
      %p44 = scmp.eq.s32.totalorder %s24, 0
      %p45 = por %p43, %p44
      %p46 = scmp.ne.s32.totalorder %s32, %s33
      %p47 = scmp.eq.s32.totalorder %s25, 1
      %p48 = por %p46, %p47
      %p50 = scmp.ne.s32.totalorder %s33, %s49
      %p51 = scmp.eq.s32.totalorder %s25, 0
      %p52 = por %p50, %p51
      %s54 = sadd.s32 %s53, 1
      %p57 = scmp.eq.s32.totalorder %s19, 1
      %p58 = scmp.ne.s32.totalorder %s53, %s55
      %p59 = scmp.eq.s32.totalorder %s19, 0
      %p60 = por %p58, %p59
      %p61 = scmp.ne.s32.totalorder %s53, %s55
      %p62 = scmp.eq.s32.totalorder %s24, 1
      %p63 = por %p61, %p62
      %p64 = scmp.ne.s32.totalorder %s55, %s56
      %p65 = scmp.eq.s32.totalorder %s24, 0
      %p66 = por %p64, %p65
      %p67 = scmp.ne.s32.totalorder %s55, %s56
      %p68 = scmp.eq.s32.totalorder %s25, 1
      %p69 = por %p67, %p68
      %p71 = scmp.ne.s32.totalorder %s56, %s70
      %p72 = scmp.eq.s32.totalorder %s25, 0
      %p73 = por %p71, %p72
      %s75 = sadd.s32 %s74, 1
      %p78 = scmp.eq.s32.totalorder %s19, 1
      %p79 = scmp.ne.s32.totalorder %s74, %s76
      %p80 = scmp.eq.s32.totalorder %s19, 0
      %p81 = por %p79, %p80
      %p82 = scmp.ne.s32.totalorder %s74, %s76
      %p83 = scmp.eq.s32.totalorder %s24, 1
      %p84 = por %p82, %p83
      %p85 = scmp.ne.s32.totalorder %s76, %s77
      %p86 = scmp.eq.s32.totalorder %s24, 0
      %p87 = por %p85, %p86
      %p88 = scmp.ne.s32.totalorder %s76, %s77
      %p89 = scmp.eq.s32.totalorder %s25, 1
      %p90 = por %p88, %p89
      %p92 = scmp.ne.s32.totalorder %s77, %s91
      %p93 = scmp.eq.s32.totalorder %s25, 0
      %p94 = por %p92, %p93
      %s96 = sadd.s32 %s95, 1
      %p99 = scmp.eq.s32.totalorder %s19, 1
      %p100 = scmp.ne.s32.totalorder %s95, %s97
      %p101 = scmp.eq.s32.totalorder %s19, 0
      %p102 = por %p100, %p101
      %p103 = scmp.ne.s32.totalorder %s95, %s97
      %p104 = scmp.eq.s32.totalorder %s24, 1
      %p105 = por %p103, %p104
      %p106 = scmp.ne.s32.totalorder %s97, %s98
      %p107 = scmp.eq.s32.totalorder %s24, 0
      %p108 = por %p106, %p107
      %p109 = scmp.ne.s32.totalorder %s97, %s98
      %p110 = scmp.eq.s32.totalorder %s25, 1
      %p111 = por %p109, %p110
      %p113 = scmp.ne.s32.totalorder %s98, %s112
      %p114 = scmp.eq.s32.totalorder %s25, 0
      %p115 = por %p113, %p114
      %s117 = sadd.s32 %s116, 1
      %p120 = scmp.eq.s32.totalorder %s19, 1
      %p121 = scmp.ne.s32.totalorder %s116, %s118
      %p122 = scmp.eq.s32.totalorder %s19, 0
      %p123 = por %p121, %p122
      %p124 = scmp.ne.s32.totalorder %s116, %s118
      %p125 = scmp.eq.s32.totalorder %s24, 1
      %p126 = por %p124, %p125
      %p127 = scmp.ne.s32.totalorder %s118, %s119
      %p128 = scmp.eq.s32.totalorder %s24, 0
      %p129 = por %p127, %p128
      %p130 = scmp.ne.s32.totalorder %s118, %s119
      %p131 = scmp.eq.s32.totalorder %s25, 1
      %p132 = por %p130, %p131
      %p134 = scmp.ne.s32.totalorder %s119, %s133
      %p135 = scmp.eq.s32.totalorder %s25, 0
      %p136 = por %p134, %p135
      %s138 = sadd.s32 %s137, 1
      %p141 = scmp.eq.s32.totalorder %s19, 1
      %p142 = scmp.ne.s32.totalorder %s137, %s139
      %p143 = scmp.eq.s32.totalorder %s19, 0
      %p144 = por %p142, %p143
      %p145 = scmp.ne.s32.totalorder %s137, %s139
      %p146 = scmp.eq.s32.totalorder %s24, 1
      %p147 = por %p145, %p146
      %p148 = scmp.ne.s32.totalorder %s139, %s140
      %p149 = scmp.eq.s32.totalorder %s24, 0
      %p150 = por %p148, %p149
      %p151 = scmp.ne.s32.totalorder %s139, %s140
      %p152 = scmp.eq.s32.totalorder %s25, 1
      %p153 = por %p151, %p152
      %p155 = scmp.ne.s32.totalorder %s140, %s154
      %p156 = scmp.eq.s32.totalorder %s25, 0
      %p157 = por %p155, %p156
      %s158 = ssub.s32 %s19, %s26
      %p159 = scmp.eq.s32.totalorder %s158, 0
      %s161 = sadd.s32 %s160, 1
      %s162 = scalar_select %p159, %s160, %s161
      %p165 = pneg %p159
      %p166 = scmp.eq.s32.totalorder %s19, 1
      %p167 = por %p165, %p166
      %p168 = scmp.ne.s32.totalorder %s160, %s163
      %p169 = scmp.eq.s32.totalorder %s19, 0
      %p170 = por %p168, %p169
      %p171 = scmp.ne.s32.totalorder %s160, %s163
      %p172 = scmp.eq.s32.totalorder %s24, 1
      %p173 = por %p171, %p172
      %p174 = scmp.ne.s32.totalorder %s163, %s164
      %p175 = scmp.eq.s32.totalorder %s24, 0
      %p176 = por %p174, %p175
      %p177 = scmp.ne.s32.totalorder %s163, %s164
      %p178 = scmp.eq.s32.totalorder %s25, 1
      %p179 = por %p177, %p178
      %p181 = scmp.ne.s32.totalorder %s164, %s180
      %p182 = scmp.eq.s32.totalorder %s25, 0
      %p183 = por %p181, %p182
      %p184 = scmp.le.s32.totalorder 1, %s19
      %p185 = scmp.lt.s32.totalorder %s19, 3
      %p186 = pnand %p184, %p185
      %p187 = pneg %p186
      // Predicated region
      $region9: #{tpu_custom_call.1} parent=5 // pred_check
        _
      $region10: #{tpu_custom_call.1} parent=5 // pred_check_branch
        %189 = sbr.rel (%p186) target = $region12
      $region11: #{tpu_custom_call.1} parent=5 // pred_region
        %s190 = ssub.s32 %s19, 1
        // Predicated region
        $region13: #{tpu_custom_call.1} parent=11 // pred_check
          %p191 = pneg %p66
        $region14: #{tpu_custom_call.1} parent=11 // pred_check_branch
          %193 = sbr.rel (%p191) target = $region16
        $region15: #{tpu_custom_call.1} parent=11 // pred_region
          %s195 = ssub.s32 512, 512
          %196 = vsyncadd [#allocation6], %s195
          %s197 = sshll.u32 [#allocation5], 4
          %s198 = int_to_ptr.vmem [resolvable:$true] %s197
          %203 = dma.hbm_to_vmem [thread:$0]  %s1, 512, %s198, [#allocation6], 256, 256, 16
        $region16: #{tpu_custom_call.1} parent=11 // pred_fallthru
          _
        // Predicated region
        $region17: #{tpu_custom_call.1} parent=11 // pred_check
          %p204 = pneg %p87
        $region18: #{tpu_custom_call.1} parent=11 // pred_check_branch
          %206 = sbr.rel (%p204) target = $region20
        $region19: #{tpu_custom_call.1} parent=11 // pred_region
          _
        $region20: #{tpu_custom_call.1} parent=11 // pred_fallthru
          _
        // Predicated region
        $region21: #{tpu_custom_call.1} parent=11 // pred_check
          %p207 = pneg %p108
        $region22: #{tpu_custom_call.1} parent=11 // pred_check_branch
          %209 = sbr.rel (%p207) target = $region24
        $region23: #{tpu_custom_call.1} parent=11 // pred_region
          _
        $region24: #{tpu_custom_call.1} parent=11 // pred_fallthru
          _
        // Predicated region
        $region25: #{tpu_custom_call.1} parent=11 // pred_check
          %p210 = pneg %p129
        $region26: #{tpu_custom_call.1} parent=11 // pred_check_branch
          %212 = sbr.rel (%p210) target = $region28
        $region27: #{tpu_custom_call.1} parent=11 // pred_region
          _
        $region28: #{tpu_custom_call.1} parent=11 // pred_fallthru
          _
        // Predicated region
        $region29: #{tpu_custom_call.1} parent=11 // pred_check
          %p213 = pneg %p150
        $region30: #{tpu_custom_call.1} parent=11 // pred_check_branch
          %215 = sbr.rel (%p213) target = $region32
        $region31: #{tpu_custom_call.1} parent=11 // pred_region
          _
        $region32: #{tpu_custom_call.1} parent=11 // pred_fallthru
          _
      $region12: #{tpu_custom_call.1} parent=5 // pred_fallthru
        _
      %p216 = scmp.lt.s32.totalorder %s19, 2
      // Predicated region
      $region33: #{tpu_custom_call.1} parent=5 // pred_check
        %p217 = pneg %p216
      $region34: #{tpu_custom_call.1} parent=5 // pred_check_branch
        %219 = sbr.rel (%p217) target = $region36
      $region35: #{tpu_custom_call.1} parent=5 // pred_region
        // Predicated region
        $region37: #{tpu_custom_call.1} parent=35 // pred_check
          %p220 = pneg %p39
        $region38: #{tpu_custom_call.1} parent=35 // pred_check_branch
          %222 = sbr.rel (%p220) target = $region40
        $region39: #{tpu_custom_call.1} parent=35 // pred_region
          %s223 = sand.u32 %s29, 1
          %s224 = scalar_lea.sflag [#allocation3], %s223
          %s225 = sand.u32 %s29, 1
          %s226 = smul.addr %s225, 8
          %s227 = scalar_lea.vmem [#allocation2], %s226
          %s228 = smul.u32 2, %s19
          %s230 = ssub.s32 128, 128
          %231 = vsyncadd %s224, %s230
          %s232 = smul.addr %s228, 64
          %s233 = scalar_lea.hbm %s0, %s232
          %s235 = sshll.u32 %s227, 4
          %s236 = int_to_ptr.vmem [resolvable:$true] %s235
          %238 = dma.hbm_to_vmem [thread:$0]  %s233, 128, %s236, %s224
        $region40: #{tpu_custom_call.1} parent=35 // pred_fallthru
          _
      $region36: #{tpu_custom_call.1} parent=5 // pred_fallthru
        _
      %p239 = scmp.le.s32.totalorder 1, %s19
      %p240 = scmp.lt.s32.totalorder %s19, 3
      %p241 = pnand %p239, %p240
      %p242 = pneg %p241
      // Predicated region
      $region41: #{tpu_custom_call.1} parent=5 // pred_check
        _
      $region42: #{tpu_custom_call.1} parent=5 // pred_check_branch
        %244 = sbr.rel (%p241) target = $region44
      $region43: #{tpu_custom_call.1} parent=5 // pred_region
        %s245 = ssub.s32 %s19, 1
        %s246 = sand.u32 %s32, 1
        %s247 = scalar_lea.sflag [#allocation3], %s246
        %s248 = sand.u32 %s32, 1
        %s249 = smul.addr %s248, 8
        %s250 = scalar_lea.vmem [#allocation2], %s249
        // Predicated region
        $region45: #{tpu_custom_call.1} parent=43 // pred_check
          %p251 = pneg %p45
        $region46: #{tpu_custom_call.1} parent=43 // pred_check_branch
          %253 = sbr.rel (%p251) target = $region48
        $region47: #{tpu_custom_call.1} parent=43 // pred_region
          %254 = dma.done %s247, 128
        $region48: #{tpu_custom_call.1} parent=43 // pred_fallthru
          _
        // Predicated region
        $region49: #{tpu_custom_call.1} parent=43 // pred_check
          %p255 = pneg %p66
        $region50: #{tpu_custom_call.1} parent=43 // pred_check_branch
          %257 = sbr.rel (%p255) target = $region52
        $region51: #{tpu_custom_call.1} parent=43 // pred_region
          %258 = dma.done [#allocation6], 512
        $region52: #{tpu_custom_call.1} parent=43 // pred_fallthru
          _
        %s259 = sand.u32 %s32, 1
        %s260 = scalar_lea.sflag [#allocation3], %s259
        %s261 = sand.u32 %s32, 1
        %s262 = smul.addr %s261, 8
        %s263 = scalar_lea.vmem [#allocation2], %s262
        %p264 = pneg %p45
        %p265 = pneg %p42
        %p266 = pneg %p66
        %p267 = pneg %p63
        %p268 = pneg %p87
        %p269 = pneg %p84
        %p270 = pneg %p108
        %p271 = pneg %p105
        %p272 = pneg %p129
        %p273 = pneg %p126
        %p274 = pneg %p150
        %p275 = pneg %p147
        %p276 = pneg %p176
        %p277 = pneg %p173
        %s278 = sand.u32 %s163, 1
        %s279 = scalar_lea.sflag [#allocation4], %s278
        %s280 = sand.u32 %s163, 1
        %s281 = smul.addr %s280, 16
        %s282 = scalar_lea.vmem [#allocation7], %s281
        %s283 = smul.u32 2, %s24
        %s284 = smul.u32 2, %s24
        %v285 = vld [vmem:[#allocation5] sm:$0xff]
        %v286 = vld [vmem:[#allocation5 + $0x8] sm:$0xff]
        %v287 = vld [vmem:[#allocation5 + $0x10] sm:$0x1]
        %v288 = vld [vmem:[#allocation5 + $0x18] sm:$0x1]
        %v289 = vld [vmem:[%s250] sm:$0xff]
        %v291 = vcombine.high %v289, %v289
        %293 = vrot.lane.b32.xlu0 %v289, 17
        %v294 = vpop.permute.xlu0 %293
        %295 = vrot.lane.b32.xlu0 %v291, 17
        %v296 = vpop.permute.xlu0 %295
        %v297 = vlaneseq
        %v298 = vand.u32 %v297, 127
        %vm299 = vcmp.lt.s32.totalorder %v298, 17
        %v300 = vsel %vm299, %v294, %v296
        %v301 = vsel %vm299, %v296, %v294
        %v302 = vlaneseq
        %v303 = vshrl.u32 %v302, 7
        %v304 = vsub.s32 0, %v303
        %v305 = vrot.slane %v285, %v304
        %v306 = vlaneseq
        %v307 = vshrl.u32 %v306, 7
        %v308 = vsub.s32 0, %v307
        %v309 = vrot.slane %v286, %v308
        %v310 = vmul.f32 %v301, %v305
        %v311 = vmul.f32 %v300, %v309
        %312 = vrot.lane.b32.xlu0 %v289, 16
        %v313 = vpop.permute.xlu0 %312
        %314 = vrot.lane.b32.xlu0 %v291, 16
        %v315 = vpop.permute.xlu0 %314
        %vm316 = vcmp.lt.s32.totalorder %v298, 16
        %v317 = vsel %vm316, %v313, %v315
        %v318 = vsel %vm316, %v315, %v313
        %v319 = vlaneseq
        %v320 = vshrl.u32 %v319, 7
        %v321 = vsub.s32 1, %v320
        %v322 = vrot.slane %v285, %v321
        %v323 = vlaneseq
        %v324 = vshrl.u32 %v323, 7
        %v325 = vsub.s32 1, %v324
        %v326 = vrot.slane %v286, %v325
        %v327 = vmul.f32 %v318, %v322
        %v328 = vmul.f32 %v317, %v326
        %329 = vrot.lane.b32.xlu0 %v289, 15
        %v330 = vpop.permute.xlu0 %329
        %331 = vrot.lane.b32.xlu0 %v291, 15
        %v332 = vpop.permute.xlu0 %331
        %vm333 = vcmp.lt.s32.totalorder %v298, 15
        %v334 = vsel %vm333, %v330, %v332
        %v335 = vsel %vm333, %v332, %v330
        %v336 = vlaneseq
        %v337 = vshrl.u32 %v336, 7
        %v338 = vsub.s32 2, %v337
        %v339 = vrot.slane %v285, %v338
        %v340 = vlaneseq
        %v341 = vshrl.u32 %v340, 7
        %v342 = vsub.s32 2, %v341
        %v343 = vrot.slane %v286, %v342
        %v344 = vmul.f32 %v335, %v339
        %v345 = vmul.f32 %v334, %v343
        %346 = vrot.lane.b32.xlu0 %v289, 1
        %v347 = vpop.permute.xlu0 %346
        %348 = vrot.lane.b32.xlu0 %v291, 1
        %v349 = vpop.permute.xlu0 %348
        %vm350 = vcmp.lt.s32.totalorder %v298, 1
        %v351 = vsel %vm350, %v347, %v349
        %v352 = vsel %vm350, %v349, %v347
        %v353 = vlaneseq
        %v354 = vshrl.u32 %v353, 7
        %v355 = vsub.s32 3, %v354
        %v356 = vrot.slane %v285, %v355
        %v357 = vlaneseq
        %v358 = vshrl.u32 %v357, 7
        %v359 = vsub.s32 3, %v358
        %v360 = vrot.slane %v286, %v359
        %v361 = vmul.f32 %v352, %v356
        %v362 = vmul.f32 %v351, %v360
        %v363 = vlaneseq
        %v364 = vshrl.u32 %v363, 7
        %v365 = vsub.s32 4, %v364
        %v366 = vrot.slane %v285, %v365
        %v367 = vlaneseq
        %v368 = vshrl.u32 %v367, 7
        %v369 = vsub.s32 4, %v368
        %v370 = vrot.slane %v286, %v369
        %v373 = vcombine.low %v366, %v370
        %v375 = vmul.f32 %v289, %v373
        %376 = vrot.lane.b32.xlu0 %v289, 127
        %v377 = vpop.permute.xlu0 %376
        %378 = vrot.lane.b32.xlu0 %v291, 127
        %v379 = vpop.permute.xlu0 %378
        %vm380 = vcmp.lt.s32.totalorder %v298, 127
        %v381 = vsel %vm380, %v377, %v379
        %v382 = vsel %vm380, %v379, %v377
        %v383 = vlaneseq
        %v384 = vshrl.u32 %v383, 7
        %v385 = vsub.s32 5, %v384
        %v386 = vrot.slane %v285, %v385
        %v387 = vlaneseq
        %v388 = vshrl.u32 %v387, 7
        %v389 = vsub.s32 5, %v388
        %v390 = vrot.slane %v286, %v389
        %v391 = vmul.f32 %v381, %v386
        %v392 = vmul.f32 %v382, %v390
        %393 = vrot.lane.b32.xlu0 %v289, 113
        %v394 = vpop.permute.xlu0 %393
        %395 = vrot.lane.b32.xlu0 %v291, 113
        %v396 = vpop.permute.xlu0 %395
        %vm397 = vcmp.lt.s32.totalorder %v298, 113
        %v398 = vsel %vm397, %v394, %v396
        %v399 = vsel %vm397, %v396, %v394
        %v400 = vlaneseq
        %v401 = vshrl.u32 %v400, 7
        %v402 = vsub.s32 6, %v401
        %v403 = vrot.slane %v285, %v402
        %v404 = vlaneseq
        %v405 = vshrl.u32 %v404, 7
        %v406 = vsub.s32 6, %v405
        %v407 = vrot.slane %v286, %v406
        %v408 = vmul.f32 %v398, %v403
        %v409 = vmul.f32 %v399, %v407
        %410 = vrot.lane.b32.xlu0 %v289, 112
        %v411 = vpop.permute.xlu0 %410
        %412 = vrot.lane.b32.xlu0 %v291, 112
        %v413 = vpop.permute.xlu0 %412
        %vm414 = vcmp.lt.s32.totalorder %v298, 112
        %v415 = vsel %vm414, %v411, %v413
        %v416 = vsel %vm414, %v413, %v411
        %v417 = vlaneseq
        %v418 = vshrl.u32 %v417, 7
        %v419 = vsub.s32 7, %v418
        %v420 = vrot.slane %v285, %v419
        %v421 = vlaneseq
        %v422 = vshrl.u32 %v421, 7
        %v423 = vsub.s32 7, %v422
        %v424 = vrot.slane %v286, %v423
        %v425 = vmul.f32 %v415, %v420
        %v426 = vmul.f32 %v416, %v424
        %427 = vrot.lane.b32.xlu0 %v289, 111
        %v428 = vpop.permute.xlu0 %427
        %429 = vrot.lane.b32.xlu0 %v291, 111
        %v430 = vpop.permute.xlu0 %429
        %vm431 = vcmp.lt.s32.totalorder %v298, 111
        %v432 = vsel %vm431, %v428, %v430
        %v433 = vsel %vm431, %v430, %v428
        %v434 = vlaneseq
        %v435 = vshrl.u32 %v434, 7
        %v436 = vsub.s32 0, %v435
        %v437 = vrot.slane %v287, %v436
        %v438 = vlaneseq
        %v439 = vshrl.u32 %v438, 7
        %v440 = vsub.s32 0, %v439
        %v441 = vrot.slane %v288, %v440
        %v442 = vmul.f32 %v432, %v437
        %v443 = vmul.f32 %v433, %v441
        %v446 = vrot.slane %v327, 4
        %v447 = vrot.slane %v328, 4
        %v452 = vrot.slane %v361, 4
        %v453 = vrot.slane %v362, 4
        %v457 = vcombine.high %v375, %v375
        %v461 = vrot.slane %v391, 4
        %v462 = vrot.slane %v392, 4
        %v467 = vrot.slane %v425, 4
        %v468 = vrot.slane %v426, 4
        %vm471 = vcmask 1043456
        %v472 = vsel %vm471, %v310, %v446
        %v473 = vsel %vm471, %v311, %v447
        %v474 = vsel %vm471, %v344, %v452
        %v475 = vsel %vm471, %v345, %v453
        %v476 = vsel %vm471, %v375, %v461
        %v477 = vsel %vm471, %v457, %v462
        %v478 = vsel %vm471, %v408, %v467
        %v479 = vsel %vm471, %v409, %v468
        %v480 = vld [vmem:[%s2] sm:$0xff]
        %vm481 = vcmask 293888
        %v483 = vsel %vm481, %v480, 0
        %v486 = vsel %vm471, %v442, 0
        %v489 = vsel %vm471, %v443, 0
        %491 = vmatprep.subr.mxu0 %v473
        %492 = vmatpush1.msra.mxu0 %v472
        %493 = vmatprep.subr.mxu0 %v475
        %494 = vmatpush1.msra.mxu0 %v474
        %495 = vmatprep.subr.mxu0 %v477
        %496 = vmatpush1.msra.mxu0 %v476
        %497 = vmatprep.subr.mxu0 %v479
        %498 = vmatpush1.msra.mxu0 %v478
        %499 = vmatprep.subr.mxu0 %v489
        %500 = vmatpush1.msra.mxu0 %v486
        %501 = vmatprep.subr.mxu0 0.0
        %502 = vmatpush1.msra.mxu0 0.0
        %503 = vmatprep.subr.mxu0 0.0
        %504 = vmatpush1.msra.mxu0 0.0
        %505 = vmatprep.subr.mxu0 0.0
        %506 = vmatpush1.msra.mxu0 0.0
        %507 = vmatprep.subr.mxu0 0.0
        %508 = vmatpush1.msra.mxu0 0.0
        %509 = vmatprep.subr.mxu0 0.0
        %510 = vmatpush1.msra.mxu0 0.0
        %511 = vmatprep.subr.mxu0 0.0
        %512 = vmatpush1.msra.mxu0 0.0
        %513 = vmatprep.subr.mxu0 0.0
        %514 = vmatpush1.msra.mxu0 0.0
        %515 = vmatprep.subr.mxu0 0.0
        %516 = vmatpush1.msra.mxu0 0.0
        %517 = vmatprep.subr.mxu0 0.0
        %518 = vmatpush1.msra.mxu0 0.0
        %519 = vmatprep.subr.mxu0 0.0
        %520 = vmatpush1.msra.mxu0 0.0
        %521 = vmatprep.subr.mxu0 0.0
        %522 = vmatpush1.msra.mxu0 0.0
        %523 = vmatprep.subr.mxu0 0.0
        %524 = vmatpush1.msra.mxu0 0.0
        %525 = vmatprep.subr.mxu0 0.0
        %526 = vmatpush1.msra.mxu0 0.0
        %527 = vmatprep.subr.mxu0 0.0
        %528 = vmatpush1.msra.mxu0 0.0
        %529 = vmatprep.subr.mxu0 0.0
        %530 = vmatpush1.msra.mxu0 0.0
        %531 = vmatprep.subr.mxu0 0.0
        %532 = vmatpush1.msra.mxu0 0.0
        %533 = vmatprep.subr.mxu0 0.0
        %534 = vmatpush1.msra.mxu0 0.0
        %535 = vmatprep.subr.mxu0 0.0
        %536 = vmatpush1.msra.mxu0 0.0
        %537 = vmatprep.subr.mxu0 0.0
        %538 = vmatpush1.msra.mxu0 0.0
        %539 = vmatprep.subr.mxu0 0.0
        %540 = vmatpush1.msra.mxu0 0.0
        %541 = vmatprep.subr.mxu0 0.0
        %542 = vmatpush1.msra.mxu0 0.0
        %543 = vmatprep.subr.mxu0 0.0
        %544 = vmatpush1.msra.mxu0 0.0
        %545 = vmatprep.subr.mxu0 0.0
        %546 = vmatpush1.msra.mxu0 0.0
        %547 = vmatprep.subr.mxu0 0.0
        %548 = vmatpush1.msra.mxu0 0.0
        %549 = vmatprep.subr.mxu0 0.0
        %550 = vmatpush1.msra.mxu0 0.0
        %551 = vmatprep.subr.mxu0 0.0
        %552 = vmatpush1.msra.mxu0 0.0
        %553 = vmatprep.subr.mxu0 0.0
        %554 = vmatpush1.msra.mxu0 0.0
        %555 = vmatprep.mubr.f32.mxu0 0.0
        %556 = vmatmul.mubr.f32.gmra.mrb[0].mxu0 %v483
        %v557 = vpop.f32.mrb[0].mxu0
        %v558 = vadd.f32 0.0, %v557
        %v559 = vpop.f32.mrb[0].mxu0
        %v560 = vadd.f32 0.0, %v559
        %561 = vdwg.mxu0
        %v562 = vadd.f32 %v558, %v560
        %563 = vadd.xlane.f32.xlu0 %v562
        %v564 = vpop.xlane.xlu0 %563
        %v565 = vmul.f32 %v558, %v558
        %v566 = vmul.f32 %v560, %v560
        %v567 = vadd.f32 %v565, %v566
        %568 = vadd.xlane.f32.xlu0 %v567
        %v569 = vpop.xlane.xlu0 %568
        %v570 = vmul.f32 %v564, 0.00390625
        %v571 = vmul.f32 %v569, 0.00390625
        %v572 = vmul.f32 %v570, %v570
        %v573 = vsub.f32 %v571, %v572
        %v574 = vsub.f32 %v558, %v570
        %v575 = vsub.f32 %v560, %v570
        %v576 = vadd.f32 %v573, 1e-05
        %v577 = vrsqrt.pop %v576
        %v578 = vmul.f32 %v574, %v577
        %v579 = vmul.f32 %v575, %v577
        %v580 = vmax.f32 %v578, 0.0
        %v581 = vmax.f32 %v579, 0.0
        %582 = vrot.lane.b32.xlu0 %v580, 17
        %v583 = vpop.permute.xlu0 %582
        %584 = vrot.lane.b32.xlu0 %v581, 17
        %v585 = vpop.permute.xlu0 %584
        %v586 = vsel %vm299, %v583, %v585
        %v587 = vsel %vm299, %v585, %v583
        %v588 = vmul.f32 %v587, %v305
        %v589 = vmul.f32 %v586, %v309
        %590 = vrot.lane.b32.xlu0 %v580, 16
        %v591 = vpop.permute.xlu0 %590
        %592 = vrot.lane.b32.xlu0 %v581, 16
        %v593 = vpop.permute.xlu0 %592
        %v594 = vsel %vm316, %v591, %v593
        %v595 = vsel %vm316, %v593, %v591
        %v596 = vmul.f32 %v595, %v322
        %v597 = vmul.f32 %v594, %v326
        %598 = vrot.lane.b32.xlu0 %v580, 15
        %v599 = vpop.permute.xlu0 %598
        %600 = vrot.lane.b32.xlu0 %v581, 15
        %v601 = vpop.permute.xlu0 %600
        %v602 = vsel %vm333, %v599, %v601
        %v603 = vsel %vm333, %v601, %v599
        %v604 = vmul.f32 %v603, %v339
        %v605 = vmul.f32 %v602, %v343
        %606 = vrot.lane.b32.xlu0 %v580, 1
        %v607 = vpop.permute.xlu0 %606
        %608 = vrot.lane.b32.xlu0 %v581, 1
        %v609 = vpop.permute.xlu0 %608
        %v610 = vsel %vm350, %v607, %v609
        %v611 = vsel %vm350, %v609, %v607
        %v612 = vmul.f32 %v611, %v356
        %v613 = vmul.f32 %v610, %v360
        %v614 = vmul.f32 %v580, %v366
        %v615 = vmul.f32 %v581, %v370
        %616 = vrot.lane.b32.xlu0 %v580, 127
        %v617 = vpop.permute.xlu0 %616
        %618 = vrot.lane.b32.xlu0 %v581, 127
        %v619 = vpop.permute.xlu0 %618
        %v620 = vsel %vm380, %v617, %v619
        %v621 = vsel %vm380, %v619, %v617
        %v622 = vmul.f32 %v620, %v386
        %v623 = vmul.f32 %v621, %v390
        %624 = vrot.lane.b32.xlu0 %v580, 113
        %v625 = vpop.permute.xlu0 %624
        %626 = vrot.lane.b32.xlu0 %v581, 113
        %v627 = vpop.permute.xlu0 %626
        %v628 = vsel %vm397, %v625, %v627
        %v629 = vsel %vm397, %v627, %v625
        %v630 = vmul.f32 %v628, %v403
        %v631 = vmul.f32 %v629, %v407
        %632 = vrot.lane.b32.xlu0 %v580, 112
        %v633 = vpop.permute.xlu0 %632
        %634 = vrot.lane.b32.xlu0 %v581, 112
        %v635 = vpop.permute.xlu0 %634
        %v636 = vsel %vm414, %v633, %v635
        %v637 = vsel %vm414, %v635, %v633
        %v638 = vmul.f32 %v636, %v420
        %v639 = vmul.f32 %v637, %v424
        %640 = vrot.lane.b32.xlu0 %v580, 111
        %v641 = vpop.permute.xlu0 %640
        %642 = vrot.lane.b32.xlu0 %v581, 111
        %v643 = vpop.permute.xlu0 %642
        %v644 = vsel %vm431, %v641, %v643
        %v645 = vsel %vm431, %v643, %v641
        %v646 = vmul.f32 %v644, %v437
        %v647 = vmul.f32 %v645, %v441
        %v648 = vld [vmem:[%s3] sm:$0xff]
        %vm649 = vcmask 588800
        %v651 = vsel %vm649, %v648, 0
        %653 = vmatprep.subr.mxu0 %v589
        %654 = vmatpush1.msra.mxu0 %v588
        %655 = vmatprep.subr.mxu0 %v597
        %656 = vmatpush1.msra.mxu0 %v596
        %657 = vmatprep.subr.mxu0 %v605
        %658 = vmatpush1.msra.mxu0 %v604
        %659 = vmatprep.subr.mxu0 %v613
        %660 = vmatpush1.msra.mxu0 %v612
        %661 = vmatprep.subr.mxu0 %v615
        %662 = vmatpush1.msra.mxu0 %v614
        %663 = vmatprep.subr.mxu0 %v623
        %664 = vmatpush1.msra.mxu0 %v622
        %665 = vmatprep.subr.mxu0 %v631
        %666 = vmatpush1.msra.mxu0 %v630
        %667 = vmatprep.subr.mxu0 %v639
        %668 = vmatpush1.msra.mxu0 %v638
        %669 = vmatprep.subr.mxu0 %v647
        %670 = vmatpush1.msra.mxu0 %v646
        %671 = vmatprep.subr.mxu0 0.0
        %672 = vmatpush1.msra.mxu0 0.0
        %673 = vmatprep.subr.mxu0 0.0
        %674 = vmatpush1.msra.mxu0 0.0
        %675 = vmatprep.subr.mxu0 0.0
        %676 = vmatpush1.msra.mxu0 0.0
        %677 = vmatprep.subr.mxu0 0.0
        %678 = vmatpush1.msra.mxu0 0.0
        %679 = vmatprep.subr.mxu0 0.0
        %680 = vmatpush1.msra.mxu0 0.0
        %681 = vmatprep.subr.mxu0 0.0
        %682 = vmatpush1.msra.mxu0 0.0
        %683 = vmatprep.subr.mxu0 0.0
        %684 = vmatpush1.msra.mxu0 0.0
        %685 = vmatprep.subr.mxu0 0.0
        %686 = vmatpush1.msra.mxu0 0.0
        %687 = vmatprep.subr.mxu0 0.0
        %688 = vmatpush1.msra.mxu0 0.0
        %689 = vmatprep.subr.mxu0 0.0
        %690 = vmatpush1.msra.mxu0 0.0
        %691 = vmatprep.subr.mxu0 0.0
        %692 = vmatpush1.msra.mxu0 0.0
        %693 = vmatprep.subr.mxu0 0.0
        %694 = vmatpush1.msra.mxu0 0.0
        %695 = vmatprep.subr.mxu0 0.0
        %696 = vmatpush1.msra.mxu0 0.0
        %697 = vmatprep.subr.mxu0 0.0
        %698 = vmatpush1.msra.mxu0 0.0
        %699 = vmatprep.subr.mxu0 0.0
        %700 = vmatpush1.msra.mxu0 0.0
        %701 = vmatprep.subr.mxu0 0.0
        %702 = vmatpush1.msra.mxu0 0.0
        %703 = vmatprep.subr.mxu0 0.0
        %704 = vmatpush1.msra.mxu0 0.0
        %705 = vmatprep.subr.mxu0 0.0
        %706 = vmatpush1.msra.mxu0 0.0
        %707 = vmatprep.subr.mxu0 0.0
        %708 = vmatpush1.msra.mxu0 0.0
        %709 = vmatprep.subr.mxu0 0.0
        %710 = vmatpush1.msra.mxu0 0.0
        %711 = vmatprep.subr.mxu0 0.0
        %712 = vmatpush1.msra.mxu0 0.0
        %713 = vmatprep.subr.mxu0 0.0
        %714 = vmatpush1.msra.mxu0 0.0
        %715 = vmatprep.subr.mxu0 0.0
        %716 = vmatpush1.msra.mxu0 0.0
        %717 = vmatprep.mubr.f32.mxu0 0.0
        %718 = vmatmul.mubr.f32.gmra.mrb[0].mxu0 %v651
        %v719 = vpop.f32.mrb[0].mxu0
        %v720 = vadd.f32 0.0, %v719
        %v721 = vpop.f32.mrb[0].mxu0
        %v722 = vadd.f32 0.0, %v721
        %723 = vdwg.mxu0
        %v724 = vadd.f32 %v720, %v722
        %725 = vadd.xlane.f32.xlu0 %v724
        %v726 = vpop.xlane.xlu0 %725
        %v727 = vmul.f32 %v720, %v720
        %v728 = vmul.f32 %v722, %v722
        %v729 = vadd.f32 %v727, %v728
        %730 = vadd.xlane.f32.xlu0 %v729
        %v731 = vpop.xlane.xlu0 %730
        %v732 = vmul.f32 %v726, 0.00390625
        %v733 = vmul.f32 %v731, 0.00390625
        %v734 = vmul.f32 %v732, %v732
        %v735 = vsub.f32 %v733, %v734
        %v736 = vsub.f32 %v720, %v732
        %v737 = vsub.f32 %v722, %v732
        %v738 = vadd.f32 %v735, 1e-05
        %v739 = vrsqrt.pop %v738
        %v740 = vmul.f32 %v736, %v739
        %v741 = vmul.f32 %v737, %v739
        %v742 = vmax.f32 %v740, 0.0
        %v743 = vmax.f32 %v741, 0.0
        %744 = vrot.lane.b32.xlu0 %v742, 17
        %v745 = vpop.permute.xlu0 %744
        %746 = vrot.lane.b32.xlu0 %v743, 17
        %v747 = vpop.permute.xlu0 %746
        %v748 = vsel %vm299, %v745, %v747
        %v749 = vsel %vm299, %v747, %v745
        %v750 = vmul.f32 %v749, %v305
        %v751 = vmul.f32 %v748, %v309
        %752 = vrot.lane.b32.xlu0 %v742, 16
        %v753 = vpop.permute.xlu0 %752
        %754 = vrot.lane.b32.xlu0 %v743, 16
        %v755 = vpop.permute.xlu0 %754
        %v756 = vsel %vm316, %v753, %v755
        %v757 = vsel %vm316, %v755, %v753
        %v758 = vmul.f32 %v757, %v322
        %v759 = vmul.f32 %v756, %v326
        %760 = vrot.lane.b32.xlu0 %v742, 15
        %v761 = vpop.permute.xlu0 %760
        %762 = vrot.lane.b32.xlu0 %v743, 15
        %v763 = vpop.permute.xlu0 %762
        %v764 = vsel %vm333, %v761, %v763
        %v765 = vsel %vm333, %v763, %v761
        %v766 = vmul.f32 %v765, %v339
        %v767 = vmul.f32 %v764, %v343
        %768 = vrot.lane.b32.xlu0 %v742, 1
        %v769 = vpop.permute.xlu0 %768
        %770 = vrot.lane.b32.xlu0 %v743, 1
        %v771 = vpop.permute.xlu0 %770
        %v772 = vsel %vm350, %v769, %v771
        %v773 = vsel %vm350, %v771, %v769
        %v774 = vmul.f32 %v773, %v356
        %v775 = vmul.f32 %v772, %v360
        %v776 = vmul.f32 %v742, %v366
        %v777 = vmul.f32 %v743, %v370
        %778 = vrot.lane.b32.xlu0 %v742, 127
        %v779 = vpop.permute.xlu0 %778
        %780 = vrot.lane.b32.xlu0 %v743, 127
        %v781 = vpop.permute.xlu0 %780
        %v782 = vsel %vm380, %v779, %v781
        %v783 = vsel %vm380, %v781, %v779
        %v784 = vmul.f32 %v782, %v386
        %v785 = vmul.f32 %v783, %v390
        %786 = vrot.lane.b32.xlu0 %v742, 113
        %v787 = vpop.permute.xlu0 %786
        %788 = vrot.lane.b32.xlu0 %v743, 113
        %v789 = vpop.permute.xlu0 %788
        %v790 = vsel %vm397, %v787, %v789
        %v791 = vsel %vm397, %v789, %v787
        %v792 = vmul.f32 %v790, %v403
        %v793 = vmul.f32 %v791, %v407
        %794 = vrot.lane.b32.xlu0 %v742, 112
        %v795 = vpop.permute.xlu0 %794
        %796 = vrot.lane.b32.xlu0 %v743, 112
        %v797 = vpop.permute.xlu0 %796
        %v798 = vsel %vm414, %v795, %v797
        %v799 = vsel %vm414, %v797, %v795
        %v800 = vmul.f32 %v798, %v420
        %v801 = vmul.f32 %v799, %v424
        %802 = vrot.lane.b32.xlu0 %v742, 111
        %v803 = vpop.permute.xlu0 %802
        %804 = vrot.lane.b32.xlu0 %v743, 111
        %v805 = vpop.permute.xlu0 %804
        %v806 = vsel %vm431, %v803, %v805
        %v807 = vsel %vm431, %v805, %v803
        %v808 = vmul.f32 %v806, %v437
        %v809 = vmul.f32 %v807, %v441
        %v810 = vld [vmem:[%s4] sm:$0xff]
        %v811 = vld [vmem:[%s5] sm:$0xff]
        %813 = vset.pattern.permute.xlu0 0
        %814 = vperm.xlu0 %813, %v811
        %v815 = vpop.permute.xlu0 %814
        %v818 = vsel %vm649, %v810, 0
        %820 = vmatprep.subr.mxu0 %v751
        %821 = vmatpush1.msra.mxu0 %v750
        %822 = vmatprep.subr.mxu0 %v759
        %823 = vmatpush1.msra.mxu0 %v758
        %824 = vmatprep.subr.mxu0 %v767
        %825 = vmatpush1.msra.mxu0 %v766
        %826 = vmatprep.subr.mxu0 %v775
        %827 = vmatpush1.msra.mxu0 %v774
        %828 = vmatprep.subr.mxu0 %v777
        %829 = vmatpush1.msra.mxu0 %v776
        %830 = vmatprep.subr.mxu0 %v785
        %831 = vmatpush1.msra.mxu0 %v784
        %832 = vmatprep.subr.mxu0 %v793
        %833 = vmatpush1.msra.mxu0 %v792
        %834 = vmatprep.subr.mxu0 %v801
        %835 = vmatpush1.msra.mxu0 %v800
        %836 = vmatprep.subr.mxu0 %v809
        %837 = vmatpush1.msra.mxu0 %v808
        %838 = vmatprep.subr.mxu0 0.0
        %839 = vmatpush1.msra.mxu0 0.0
        %840 = vmatprep.subr.mxu0 0.0
        %841 = vmatpush1.msra.mxu0 0.0
        %842 = vmatprep.subr.mxu0 0.0
        %843 = vmatpush1.msra.mxu0 0.0
        %844 = vmatprep.subr.mxu0 0.0
        %845 = vmatpush1.msra.mxu0 0.0
        %846 = vmatprep.subr.mxu0 0.0
        %847 = vmatpush1.msra.mxu0 0.0
        %848 = vmatprep.subr.mxu0 0.0
        %849 = vmatpush1.msra.mxu0 0.0
        %850 = vmatprep.subr.mxu0 0.0
        %851 = vmatpush1.msra.mxu0 0.0
        %852 = vmatprep.subr.mxu0 0.0
        %853 = vmatpush1.msra.mxu0 0.0
        %854 = vmatprep.subr.mxu0 0.0
        %855 = vmatpush1.msra.mxu0 0.0
        %856 = vmatprep.subr.mxu0 0.0
        %857 = vmatpush1.msra.mxu0 0.0
        %858 = vmatprep.subr.mxu0 0.0
        %859 = vmatpush1.msra.mxu0 0.0
        %860 = vmatprep.subr.mxu0 0.0
        %861 = vmatpush1.msra.mxu0 0.0
        %862 = vmatprep.subr.mxu0 0.0
        %863 = vmatpush1.msra.mxu0 0.0
        %864 = vmatprep.subr.mxu0 0.0
        %865 = vmatpush1.msra.mxu0 0.0
        %866 = vmatprep.subr.mxu0 0.0
        %867 = vmatpush1.msra.mxu0 0.0
        %868 = vmatprep.subr.mxu0 0.0
        %869 = vmatpush1.msra.mxu0 0.0
        %870 = vmatprep.subr.mxu0 0.0
        %871 = vmatpush1.msra.mxu0 0.0
        %872 = vmatprep.subr.mxu0 0.0
        %873 = vmatpush1.msra.mxu0 0.0
        %874 = vmatprep.subr.mxu0 0.0
        %875 = vmatpush1.msra.mxu0 0.0
        %876 = vmatprep.subr.mxu0 0.0
        %877 = vmatpush1.msra.mxu0 0.0
        %878 = vmatprep.subr.mxu0 0.0
        %879 = vmatpush1.msra.mxu0 0.0
        %880 = vmatprep.subr.mxu0 0.0
        %881 = vmatpush1.msra.mxu0 0.0
        %882 = vmatprep.subr.mxu0 0.0
        %883 = vmatpush1.msra.mxu0 0.0
        %884 = vmatprep.mubr.f32.mxu0 0.0
        %885 = vmatmul.mubr.f32.gmra.mrb[0].mxu0 %v818
        %v886 = vpop.f32.mrb[0].mxu0
        %v887 = vadd.f32 %v815, %v886
        %v888 = vpop.f32.mrb[0].mxu0
        %v889 = vadd.f32 %v815, %v888
        %890 = vdwg.mxu0
        %v891 = vmax.f32 %v887, 0.0
        %v892 = vmax.f32 %v889, 0.0
        %v895 = vcombine.low %v891, %v892
        %v897 = vsub.f32 %v289, %v895
        %v898 = vcombine.high %v891, %v892
        %v900 = vsub.f32 %v897, %v898
        %v902 = vcombine.high %v897, %v897
        %v905 = vcombine.low %v900, %v900
        %v907 = vsel %vm471, %v897, %v905
        %v908 = vsel %vm471, %v902, %v900
        %909 = vst [vmem:[%s282] sm:$0xff] %v907
        %910 = vst [vmem:[%s282 + $0x8] sm:$0xff] %v908
        %s911 = sand.u32 %s163, 1
        %s912 = scalar_lea.sflag [#allocation4], %s911
        %s913 = sand.u32 %s163, 1
        %s914 = smul.addr %s913, 16
        %s915 = scalar_lea.vmem [#allocation7], %s914
        // Predicated region
        $region53: #{tpu_custom_call.1} parent=43 // pred_check
          %p916 = pneg %p173
        $region54: #{tpu_custom_call.1} parent=43 // pred_check_branch
          %918 = sbr.rel (%p916) target = $region56
        $region55: #{tpu_custom_call.1} parent=43 // pred_region
          %s919 = smul.u32 2, %s24
          %s921 = ssub.s32 256, 256
          %922 = vsyncadd %s912, %s921
          %s923 = smul.addr %s919, 128
          %s924 = scalar_lea.hbm %s6, %s923
          %s926 = sshll.u32 %s915, 4
          %s927 = int_to_ptr.vmem [resolvable:$true] %s926
          %929 = dma.vmem_to_hbm [thread:$0]  %s927, 256, %s924, %s912
        $region56: #{tpu_custom_call.1} parent=43 // pred_fallthru
          _
      $region44: #{tpu_custom_call.1} parent=5 // pred_fallthru
        _
      %p930 = scmp.le.s32.totalorder 2, %s19
      // Predicated region
      $region57: #{tpu_custom_call.1} parent=5 // pred_check
        %p931 = pneg %p930
      $region58: #{tpu_custom_call.1} parent=5 // pred_check_branch
        %933 = sbr.rel (%p931) target = $region60
      $region59: #{tpu_custom_call.1} parent=5 // pred_region
        %s934 = ssub.s32 %s19, 2
        // Predicated region
        $region61: #{tpu_custom_call.1} parent=59 // pred_check
          %p935 = pneg %p179
        $region62: #{tpu_custom_call.1} parent=59 // pred_check_branch
          %937 = sbr.rel (%p935) target = $region64
        $region63: #{tpu_custom_call.1} parent=59 // pred_region
          %s938 = sand.u32 %s164, 1
          %s939 = scalar_lea.sflag [#allocation4], %s938
          %s940 = sand.u32 %s164, 1
          %s941 = smul.addr %s940, 16
          %s942 = scalar_lea.vmem [#allocation7], %s941
          %943 = dma.done %s939, 256
        $region64: #{tpu_custom_call.1} parent=59 // pred_fallthru
          _
      $region60: #{tpu_custom_call.1} parent=5 // pred_fallthru
        _
    $region6: #{tpu_custom_call.1} parent=1 // loop_footer
      %s23 = sadd.s32 1, %s19
    $region7: #{tpu_custom_call.1} parent=1 // loop_footer_branch
      %18 = sbr.rel target = $region3
    $region8: #{tpu_custom_call.1} parent=1 // loop_exit
      _
    %944 = vsyncpa [#allocation3], 1
    %s945 = scalar_lea.sflag [#allocation3], 1
    %946 = vsyncpa %s945, 1
    %947 = vsyncpa [#allocation6], 1
    %948 = vsyncpa [#allocation4], 1
    %s949 = scalar_lea.sflag [#allocation4], 1
    %950 = vsyncpa %s949, 1

</llo_original>
